<compile_context>
chip_gen: v5e
topology: v5e:2x2
jax: 0.10.0
libtpu: 0.0.40
codegen_flags: <defaults>
</compile_context>

<pallas_src>
import functools

import jax
import jax.numpy as jnp
from jax import lax
from jax.experimental import pallas as pl
from jax.experimental.pallas import tpu as pltpu


def _round_up(x, m):
    return ((x + m - 1) // m) * m


# ----------------------------------------------------------------------------
# Shared padded/lane-aligned GRU-cell + Linear + LogSoftmax math.
# ----------------------------------------------------------------------------
def _gru_math(x, h, wih, whh, b_rz, b_in, b_hn, who, b_o, *, out_valid):
    Hp = h.shape[1]

    # Two MXU passes produce all three gates; each gate occupies a full
    # 128-lane-aligned block (Hp is a multiple of 128), so the slices below
    # are free re-indexing (no masked lane selects).
    gi = jnp.dot(x, wih, preferred_element_type=jnp.float32)  # (B, 3*Hp)
    gh = jnp.dot(h, whh, preferred_element_type=jnp.float32)  # (B, 3*Hp)

    # r and z use a single fused bias (b_ir + b_hr, b_iz + b_hz).
    s_rz = gi[:, : 2 * Hp] + gh[:, : 2 * Hp] + b_rz
    r = jax.nn.sigmoid(s_rz[:, :Hp])
    z = jax.nn.sigmoid(s_rz[:, Hp:])
    n = jnp.tanh(gi[:, 2 * Hp :] + b_in + r * (gh[:, 2 * Hp :] + b_hn))
    h_new = (1.0 - z) * n + z * h

    # h2o linear + log-softmax (padded output lanes masked out of the lse).
    logits = jnp.dot(h_new, who, preferred_element_type=jnp.float32) + b_o
    logits = jnp.where(out_valid, logits, -1e30)
    m = jnp.max(logits, axis=1, keepdims=True)
    lse = m + jnp.log(jnp.sum(jnp.exp(logits - m), axis=1, keepdims=True))
    return logits - lse, h_new


# ----------------------------------------------------------------------------
# Kernels
# ----------------------------------------------------------------------------
def _gru_step_kernel(x_ref, h_ref, wih_ref, whh_ref, b_rz_ref, b_in_ref,
                     b_hn_ref, who_ref, bo_ref, out_ref, hnew_ref, *,
                     output_size):
    out_valid = lax.broadcasted_iota(jnp.int32, out_ref.shape, 1) < output_size
    out, h_new = _gru_math(
        x_ref[...], h_ref[...], wih_ref[...], whh_ref[...],
        b_rz_ref[...], b_in_ref[...], b_hn_ref[...],
        who_ref[...], bo_ref[...], out_valid=out_valid)
    out_ref[...] = out
    hnew_ref[...] = h_new


def _gru_seq_kernel(x_ref, h0_ref, wih_ref, whh_ref, b_rz_ref, b_in_ref,
                    b_hn_ref, who_ref, bo_ref, out_ref, h_ref, *,
                    output_size):
    # h_ref is a resident output block (constant index_map over the time grid)
    # and doubles as the hidden-state carry.
    @pl.when(pl.program_id(0) == 0)
    def _():
        h_ref[...] = h0_ref[...]

    out_valid = (lax.broadcasted_iota(
        jnp.int32, (out_ref.shape[1], out_ref.shape[2]), 1) < output_size)
    out, h_new = _gru_math(
        x_ref[0], h_ref[...], wih_ref[...], whh_ref[...],
        b_rz_ref[...], b_in_ref[...], b_hn_ref[...],
        who_ref[...], bo_ref[...], out_valid=out_valid)
    out_ref[0] = out
    h_ref[...] = h_new


# ----------------------------------------------------------------------------
# Parameter handling (PyTorch layout -> padded, pre-transposed, gate-fused).
# ----------------------------------------------------------------------------
def init_params(key, input_size, hidden_size, output_size):
    """Deterministic params matching PyTorch GRUCell / Linear shapes."""
    k = jax.random.split(key, 6)
    s = 1.0 / jnp.sqrt(hidden_size)
    w_ih = jax.random.uniform(k[0], (3 * hidden_size, input_size),
                              minval=-s, maxval=s, dtype=jnp.float32)
    w_hh = jax.random.uniform(k[1], (3 * hidden_size, hidden_size),
                              minval=-s, maxval=s, dtype=jnp.float32)
    b_ih = jax.random.uniform(k[2], (3 * hidden_size,),
                              minval=-s, maxval=s, dtype=jnp.float32)
    b_hh = jax.random.uniform(k[3], (3 * hidden_size,),
                              minval=-s, maxval=s, dtype=jnp.float32)
    w_ho = jax.random.uniform(k[4], (output_size, hidden_size),
                              minval=-s, maxval=s, dtype=jnp.float32)
    b_ho = jax.random.uniform(k[5], (output_size,),
                              minval=-s, maxval=s, dtype=jnp.float32)
    return (w_ih, w_hh, b_ih, b_hh, w_ho, b_ho)


def prepare_params(params, input_size, hidden_size, output_size):
    """One-time re-layout: transpose, pad gates to 128-lane blocks, fuse r/z biases."""
    w_ih, w_hh, b_ih, b_hh, w_ho, b_ho = params
    H = hidden_size
    Ip = _round_up(input_size, 128)
    Hp = _round_up(hidden_size, 128)
    Op = _round_up(output_size, 128)

    def pad2(a, rows, cols):
        return jnp.pad(a, ((0, rows - a.shape[0]), (0, cols - a.shape[1])))

    def pad1(v, n):
        return jnp.pad(v, (0, n - v.shape[0]))

    wih_blocks, whh_blocks = [], []
    for g in range(3):  # gate order [r, z, n]
        wih_blocks.append(pad2(w_ih[g * H:(g + 1) * H, :].T, Ip, Hp))
        whh_blocks.append(pad2(w_hh[g * H:(g + 1) * H, :].T, Hp, Hp))
    wih_p = jnp.concatenate(wih_blocks, axis=1)   # (Ip, 3*Hp)
    whh_p = jnp.concatenate(whh_blocks, axis=1)   # (Hp, 3*Hp)

    b_r = pad1(b_ih[0:H] + b_hh[0:H], Hp)
    b_z = pad1(b_ih[H:2 * H] + b_hh[H:2 * H], Hp)
    b_rz = jnp.concatenate([b_r, b_z]).reshape(1, 2 * Hp)
    b_in = pad1(b_ih[2 * H:3 * H], Hp).reshape(1, Hp)
    b_hn = pad1(b_hh[2 * H:3 * H], Hp).reshape(1, Hp)

    who_p = pad2(w_ho.T, Hp, Op)                  # (Hp, Op)
    bo_p = pad1(b_ho, Op).reshape(1, Op)

    dims = (input_size, hidden_size, output_size, Ip, Hp, Op)
    return (wih_p, whh_p, b_rz, b_in, b_hn, who_p, bo_p, dims)


# ----------------------------------------------------------------------------
# Wrappers
# ----------------------------------------------------------------------------
def rnn_gru_forward(x, h, prepped):
    """One RNN_GRU.forward step: returns (log_probs, new_hidden)."""
    wih_p, whh_p, b_rz, b_in, b_hn, who_p, bo_p, dims = prepped
    input_size, hidden_size, output_size, Ip, Hp, Op = dims
    B = x.shape[0]
    Bp = _round_up(max(B, 8), 8)

    xp = jnp.zeros((Bp, Ip), jnp.float32).at[:B, :input_size].set(x)
    hp = jnp.zeros((Bp, Hp), jnp.float32).at[:B, :hidden_size].set(h)

    def full(shape):
        return pl.BlockSpec(shape, lambda: (0,) * len(shape))

    kernel = functools.partial(_gru_step_kernel, output_size=output_size)
    out_p, hnew_p = pl.pallas_call(
        kernel,
        out_shape=(
            jax.ShapeDtypeStruct((Bp, Op), jnp.float32),
            jax.ShapeDtypeStruct((Bp, Hp), jnp.float32),
        ),
        in_specs=[
            full(xp.shape), full(hp.shape),
            full(wih_p.shape), full(whh_p.shape),
            full(b_rz.shape), full(b_in.shape), full(b_hn.shape),
            full(who_p.shape), full(bo_p.shape),
        ],
        out_specs=(full((Bp, Op)), full((Bp, Hp))),
    )(xp, hp, wih_p, whh_p, b_rz, b_in, b_hn, who_p, bo_p)

    return out_p[:B, :output_size], hnew_p[:B, :hidden_size]


def rnn_gru_sequence(xs, h0, prepped):
    """T fused GRU steps in one pallas_call. xs: (T, B, input_size)."""
    wih_p, whh_p, b_rz, b_in, b_hn, who_p, bo_p, dims = prepped
    input_size, hidden_size, output_size, Ip, Hp, Op = dims
    T, B, _ = xs.shape
    Bp = _round_up(max(B, 8), 8)

    xsp = jnp.zeros((T, Bp, Ip), jnp.float32).at[:, :B, :input_size].set(xs)
    h0p = jnp.zeros((Bp, Hp), jnp.float32).at[:B, :hidden_size].set(h0)

    def const(shape):
        return pl.BlockSpec(shape, lambda t: (0,) * len(shape))

    kernel = functools.partial(_gru_seq_kernel, output_size=output_size)
    out_p, h_fin = pl.pallas_call(
        kernel,
        grid=(T,),
        out_shape=(
            jax.ShapeDtypeStruct((T, Bp, Op), jnp.float32),
            jax.ShapeDtypeStruct((Bp, Hp), jnp.float32),
        ),
        in_specs=[
            pl.BlockSpec((1, Bp, Ip), lambda t: (t, 0, 0)),   # x_t
            const(h0p.shape),                                  # h0 (read once)
            const(wih_p.shape), const(whh_p.shape),            # weights resident
            const(b_rz.shape), const(b_in.shape), const(b_hn.shape),
            const(who_p.shape), const(bo_p.shape),
        ],
        out_specs=(
            pl.BlockSpec((1, Bp, Op), lambda t: (t, 0, 0)),    # per-step log-probs
            pl.BlockSpec((Bp, Hp), lambda t: (0, 0)),          # hidden carry / final h
        ),
        compiler_params=pltpu.CompilerParams(
            dimension_semantics=("arbitrary",)),               # sequential in time
    )(xsp, h0p, wih_p, whh_p, b_rz, b_in, b_hn, who_p, bo_p)

    return out_p[:, :B, :output_size], h_fin[:B, :hidden_size]


# ----------------------------------------------------------------------------
# Pure-JAX reference
# ----------------------------------------------------------------------------
def _reference_forward(x, h, params):
    w_ih, w_hh, b_ih, b_hh, w_ho, b_ho = params
    H = h.shape[1]
    gi = x @ w_ih.T + b_ih
    gh = h @ w_hh.T + b_hh
    r = jax.nn.sigmoid(gi[:, :H] + gh[:, :H])
    z = jax.nn.sigmoid(gi[:, H:2 * H] + gh[:, H:2 * H])
    n = jnp.tanh(gi[:, 2 * H:] + r * gh[:, 2 * H:])
    h_new = (1.0 - z) * n + z * h
    logits = h_new @ w_ho.T + b_ho
    return jax.nn.log_softmax(logits, axis=1), h_new


def _reference_sequence(xs, h0, params):
    outs, h = [], h0
    for t in range(xs.shape[0]):
        o, h = _reference_forward(xs[t], h, params)
        outs.append(o)
    return jnp.stack(outs), h


if __name__ == "__main__":
    input_size, hidden_size, output_size = 16, 32, 18
    batch, seq_len = 2, 8

    key = jax.random.PRNGKey(0)
    k_params, k_x, k_seq = jax.random.split(key, 3)
    params = init_params(k_params, input_size, hidden_size, output_size)
    prepped = prepare_params(params, input_size, hidden_size, output_size)

    x = jax.random.normal(k_x, (batch, input_size), dtype=jnp.float32)
    h0 = jnp.zeros((batch, hidden_size), dtype=jnp.float32)  # initHidden()

    # Single forward step (matches RNN_GRU.forward semantics).
    out, h1 = rnn_gru_forward(x, h0, prepped)
    out = jax.block_until_ready(out)
    h1 = jax.block_until_ready(h1)
    ref_out, ref_h1 = _reference_forward(x, h0, params)
    assert jnp.allclose(out, ref_out, atol=1e-5, rtol=1e-5)
    assert jnp.allclose(h1, ref_h1, atol=1e-5, rtol=1e-5)

    # Fused sequence (one pallas_call for all timesteps).
    xs = jax.random.normal(k_seq, (seq_len, batch, input_size), dtype=jnp.float32)
    outs, hT = rnn_gru_sequence(xs, h0, prepped)
    outs = jax.block_until_ready(outs)
    hT = jax.block_until_ready(hT)
    ref_outs, ref_hT = _reference_sequence(xs, h0, params)
    assert jnp.allclose(outs, ref_outs, atol=1e-4, rtol=1e-4)
    assert jnp.allclose(hT, ref_hT, atol=1e-4, rtol=1e-4)

    print("KERNEL_OK")
</pallas_src>

<mosaic_0001>
module attributes {stable_mosaic.version = 11 : i64} {
  func.func @_gru_step_kernel(%arg0: memref<8x128xf32, #tpu.memory_space<vmem>>, %arg1: memref<8x128xf32, #tpu.memory_space<vmem>>, %arg2: memref<128x384xf32, #tpu.memory_space<vmem>>, %arg3: memref<128x384xf32, #tpu.memory_space<vmem>>, %arg4: memref<1x256xf32, #tpu.memory_space<vmem>>, %arg5: memref<1x128xf32, #tpu.memory_space<vmem>>, %arg6: memref<1x128xf32, #tpu.memory_space<vmem>>, %arg7: memref<128x128xf32, #tpu.memory_space<vmem>>, %arg8: memref<1x128xf32, #tpu.memory_space<vmem>>, %arg9: memref<8x128xf32, #tpu.memory_space<vmem>>, %arg10: memref<8x128xf32, #tpu.memory_space<vmem>>) attributes {dimension_semantics = [], scalar_prefetch = 0 : i64, scratch_operands = 0 : i64, tpu.core_type = #tpu.core_type<tc>} {
    %0 = tpu.iota {dimensions = array<i32: 1>} : vector<8x128xi32>
    %c18_i32 = arith.constant 18 : i32
    %1 = vector.broadcast %c18_i32 : i32 to vector<8x128xi32>
    %2 = arith.cmpi slt, %0, %1 : vector<8x128xi32>
    %c0 = arith.constant 0 : index
    %c0_0 = arith.constant 0 : index
    %3 = vector.load %arg0[%c0, %c0_0] : memref<8x128xf32, #tpu.memory_space<vmem>>, vector<8x128xf32>
    %c0_1 = arith.constant 0 : index
    %c0_2 = arith.constant 0 : index
    %4 = vector.load %arg1[%c0_1, %c0_2] : memref<8x128xf32, #tpu.memory_space<vmem>>, vector<8x128xf32>
    %c0_3 = arith.constant 0 : index
    %c0_4 = arith.constant 0 : index
    %5 = vector.load %arg2[%c0_3, %c0_4] : memref<128x384xf32, #tpu.memory_space<vmem>>, vector<128x384xf32>
    %c0_5 = arith.constant 0 : index
    %c0_6 = arith.constant 0 : index
    %6 = vector.load %arg3[%c0_5, %c0_6] : memref<128x384xf32, #tpu.memory_space<vmem>>, vector<128x384xf32>
    %c0_7 = arith.constant 0 : index
    %c0_8 = arith.constant 0 : index
    %7 = vector.load %arg4[%c0_7, %c0_8] : memref<1x256xf32, #tpu.memory_space<vmem>>, vector<1x256xf32>
    %c0_9 = arith.constant 0 : index
    %c0_10 = arith.constant 0 : index
    %8 = vector.load %arg5[%c0_9, %c0_10] : memref<1x128xf32, #tpu.memory_space<vmem>>, vector<1x128xf32>
    %c0_11 = arith.constant 0 : index
    %c0_12 = arith.constant 0 : index
    %9 = vector.load %arg6[%c0_11, %c0_12] : memref<1x128xf32, #tpu.memory_space<vmem>>, vector<1x128xf32>
    %c0_13 = arith.constant 0 : index
    %c0_14 = arith.constant 0 : index
    %10 = vector.load %arg7[%c0_13, %c0_14] : memref<128x128xf32, #tpu.memory_space<vmem>>, vector<128x128xf32>
    %c0_15 = arith.constant 0 : index
    %c0_16 = arith.constant 0 : index
    %11 = vector.load %arg8[%c0_15, %c0_16] : memref<1x128xf32, #tpu.memory_space<vmem>>, vector<1x128xf32>
    %cst = arith.constant dense<0.000000e+00> : vector<8x384xf32>
    %12 = tpu.matmul %3, %5, %cst {dimension_numbers = #tpu.dot_dimension_numbers<[1], [0], [0], [1], [0, 0, 1, 1], [], []>} : vector<8x128xf32>, vector<128x384xf32>, vector<8x384xf32> -> vector<8x384xf32>
    %cst_17 = arith.constant dense<0.000000e+00> : vector<8x384xf32>
    %13 = tpu.matmul %4, %6, %cst_17 {dimension_numbers = #tpu.dot_dimension_numbers<[1], [0], [0], [1], [0, 0, 1, 1], [], []>} : vector<8x128xf32>, vector<128x384xf32>, vector<8x384xf32> -> vector<8x384xf32>
    %14 = vector.extract_strided_slice %12 {offsets = [0, 0], sizes = [8, 256], strides = [1, 1]} : vector<8x384xf32> to vector<8x256xf32>
    %15 = vector.extract_strided_slice %13 {offsets = [0, 0], sizes = [8, 256], strides = [1, 1]} : vector<8x384xf32> to vector<8x256xf32>
    %16 = arith.addf %14, %15 : vector<8x256xf32>
    %17 = vector.broadcast %7 : vector<1x256xf32> to vector<8x256xf32>
    %18 = arith.addf %16, %17 : vector<8x256xf32>
    %19 = vector.extract_strided_slice %18 {offsets = [0, 0], sizes = [8, 128], strides = [1, 1]} : vector<8x256xf32> to vector<8x128xf32>
    %20 = arith.negf %19 : vector<8x128xf32>
    %21 = math.exp %20 : vector<8x128xf32>
    %cst_18 = arith.constant 1.000000e+00 : f32
    %22 = vector.broadcast %cst_18 : f32 to vector<8x128xf32>
    %23 = arith.addf %22, %21 : vector<8x128xf32>
    %24 = arith.divf %22, %23 : vector<8x128xf32>
    %25 = vector.extract_strided_slice %18 {offsets = [0, 128], sizes = [8, 128], strides = [1, 1]} : vector<8x256xf32> to vector<8x128xf32>
    %26 = arith.negf %25 : vector<8x128xf32>
    %27 = math.exp %26 : vector<8x128xf32>
    %cst_19 = arith.constant 1.000000e+00 : f32
    %28 = vector.broadcast %cst_19 : f32 to vector<8x128xf32>
    %29 = arith.addf %28, %27 : vector<8x128xf32>
    %30 = arith.divf %28, %29 : vector<8x128xf32>
    %31 = vector.extract_strided_slice %12 {offsets = [0, 256], sizes = [8, 128], strides = [1, 1]} : vector<8x384xf32> to vector<8x128xf32>
    %32 = vector.broadcast %8 : vector<1x128xf32> to vector<8x128xf32>
    %33 = arith.addf %31, %32 : vector<8x128xf32>
    %34 = vector.extract_strided_slice %13 {offsets = [0, 256], sizes = [8, 128], strides = [1, 1]} : vector<8x384xf32> to vector<8x128xf32>
    %35 = vector.broadcast %9 : vector<1x128xf32> to vector<8x128xf32>
    %36 = arith.addf %34, %35 : vector<8x128xf32>
    %37 = arith.mulf %24, %36 : vector<8x128xf32>
    %38 = arith.addf %33, %37 : vector<8x128xf32>
    %39 = math.tanh %38 : vector<8x128xf32>
    %cst_20 = arith.constant 1.000000e+00 : f32
    %40 = vector.broadcast %cst_20 : f32 to vector<8x128xf32>
    %41 = arith.subf %40, %30 : vector<8x128xf32>
    %42 = arith.mulf %41, %39 : vector<8x128xf32>
    %43 = arith.mulf %30, %4 : vector<8x128xf32>
    %44 = arith.addf %42, %43 : vector<8x128xf32>
    %cst_21 = arith.constant dense<0.000000e+00> : vector<8x128xf32>
    %45 = tpu.matmul %44, %10, %cst_21 {dimension_numbers = #tpu.dot_dimension_numbers<[1], [0], [0], [1], [0, 0, 1, 1], [], []>} : vector<8x128xf32>, vector<128x128xf32>, vector<8x128xf32> -> vector<8x128xf32>
    %46 = vector.broadcast %11 : vector<1x128xf32> to vector<8x128xf32>
    %47 = arith.addf %45, %46 : vector<8x128xf32>
    %cst_22 = arith.constant -1.000000e+30 : f32
    %48 = vector.broadcast %cst_22 : f32 to vector<8x128xf32>
    %49 = arith.select %2, %47, %48 : vector<8x128xi1>, vector<8x128xf32>
    %cst_23 = arith.constant dense<0xFF800000> : vector<8xf32>
    %50 = vector.multi_reduction <maximumf>, %49, %cst_23 [1] : vector<8x128xf32> to vector<8xf32>
    %51 = vector.shape_cast %50 : vector<8xf32> to vector<8x1xf32>
    %52 = vector.broadcast %51 : vector<8x1xf32> to vector<8x128xf32>
    %53 = arith.subf %49, %52 : vector<8x128xf32>
    %54 = math.exp %53 : vector<8x128xf32>
    %cst_24 = arith.constant dense<0.000000e+00> : vector<8xf32>
    %55 = vector.multi_reduction <add>, %54, %cst_24 [1] : vector<8x128xf32> to vector<8xf32>
    %56 = vector.shape_cast %55 : vector<8xf32> to vector<8x1xf32>
    %57 = math.log %56 : vector<8x1xf32>
    %58 = arith.addf %51, %57 : vector<8x1xf32>
    %59 = vector.broadcast %58 : vector<8x1xf32> to vector<8x128xf32>
    %60 = arith.subf %49, %59 : vector<8x128xf32>
    %c0_25 = arith.constant 0 : index
    %c0_26 = arith.constant 0 : index
    %61 = vector.load %arg9[%c0_25, %c0_26] : memref<8x128xf32, #tpu.memory_space<vmem>>, vector<8x128xf32>
    tpu.vector_store %arg9[%c0_25, %c0_26], %60 {strides = array<i32>} : memref<8x128xf32, #tpu.memory_space<vmem>>, vector<8x128xf32>,
    %c0_27 = arith.constant 0 : index
    %c0_28 = arith.constant 0 : index
    %62 = vector.load %arg10[%c0_27, %c0_28] : memref<8x128xf32, #tpu.memory_space<vmem>>, vector<8x128xf32>
    tpu.vector_store %arg10[%c0_27, %c0_28], %44 {strides = array<i32>} : memref<8x128xf32, #tpu.memory_space<vmem>>, vector<8x128xf32>,
    return
  }
}

</mosaic_0001>

<llo_original>
// kernel: tpu_custom_call.1
$region0: #{tpu_custom_call.1}
  #allocation0 [shape = 'u32[]', space=smem, size = 0x4, offset = 0x4, fixed_abs, tag = 'smem constant byte address 0x4 - core index']
  #allocation1 [shape = 'u32[72,128]{1,0:T(1,128)}', space=vmem, size = 0x9000, scoped, tag = 'internal scratch']
  %s0 = inlined_call_operand.hbm [shape: f32[8,128], index: 0, kind: input, shape index: {}]
  %s1 = inlined_call_operand.hbm [shape: f32[8,128], index: 1, kind: input, shape index: {}]
  %s2 = inlined_call_operand.hbm [shape: f32[128,384], index: 2, kind: input, shape index: {}]
  %s3 = inlined_call_operand.hbm [shape: f32[128,384], index: 3, kind: input, shape index: {}]
  %s4 = inlined_call_operand.vmem [shape: f32[1,256], index: 4, kind: input, shape index: {}]
  %s5 = inlined_call_operand.vmem [shape: f32[1,128], index: 5, kind: input, shape index: {}]
  %s6 = inlined_call_operand.vmem [shape: f32[1,128], index: 6, kind: input, shape index: {}]
  %s7 = inlined_call_operand.hbm [shape: f32[128,128], index: 7, kind: input, shape index: {}]
  %s8 = inlined_call_operand.vmem [shape: f32[1,128], index: 8, kind: input, shape index: {}]
  %s9 = inlined_call_operand.hbm [shape: f32[8,128], index: 9, kind: output, shape index: {0}]
  %s10 = inlined_call_operand.hbm [shape: f32[8,128], index: 10, kind: output, shape index: {1}]
  %11 = xla_tuple %s9, %s10
  %s12 = sld [smem:[#allocation0]]
  $region74: #{tpu_custom_call.1} parent=0
    _
  %s14 = ssub.s32 1, %s12
  %s15 = scalar_select 0, %s14, %s12
  $region1: #{tpu_custom_call.1} parent=0
    #allocation2 [shape = 'u8[4096]{0}', space=vmem, size = 0x1000, scoped, tag = 'input window, operand 0, single buffered']
    #allocation3 [shape = 's32[1]{0}', space=sflag, size = 0x4, scoped, tag = 'scoped memory for tpu_custom_call.1']
    #allocation4 [shape = 's32[1]{0}', space=sflag, size = 0x4, scoped, tag = 'scoped memory for tpu_custom_call.1']
    #allocation5 [shape = 'u8[4096]{0}', space=vmem, size = 0x1000, scoped, tag = 'input window, operand 1, single buffered']
    #allocation6 [shape = 's32[1]{0}', space=sflag, size = 0x4, scoped, tag = 'scoped memory for tpu_custom_call.1']
    #allocation7 [shape = 'u8[196608]{0}', space=vmem, size = 0x30000, scoped, tag = 'input window, operand 2, single buffered']
    #allocation8 [shape = 'u8[196608]{0}', space=vmem, size = 0x30000, scoped, tag = 'input window, operand 3, single buffered']
    #allocation9 [shape = 's32[1]{0}', space=sflag, size = 0x4, scoped, tag = 'scoped memory for tpu_custom_call.1']
    #allocation10 [shape = 'u8[65536]{0}', space=vmem, size = 0x10000, scoped, tag = 'input window, operand 7, single buffered']
    #allocation11 [shape = 'u8[4096]{0}', space=vmem, size = 0x1000, scoped, tag = 'output window, operand 0, single buffered']
    #allocation12 [shape = 'u8[4096]{0}', space=vmem, size = 0x1000, scoped, tag = 'output window, operand 1, single buffered']
    #allocation13 [shape = 's32[1]{0}', space=sflag, size = 0x4, scoped, tag = 'scoped memory for tpu_custom_call.1']
    %16 = vsyncpa [#allocation3], 0
    %17 = vsyncpa [#allocation6], 0
    %18 = vsyncpa [#allocation9], 0
    %19 = vsyncpa [#allocation4], 0
    %20 = vsyncpa [#allocation13], 0
    // Predicated region
    $region2: #{tpu_custom_call.1} parent=1 // pred_check
      _
    $region3: #{tpu_custom_call.1} parent=1 // pred_check_branch
      %22 = sbr.rel (0) target = $region5
    $region4: #{tpu_custom_call.1} parent=1 // pred_region
      %24 = vsyncadd [#allocation3], 0
      %s26 = sshll.u32 %s0, 4
      %s27 = int_to_ptr.hbm [resolvable:$true] %s26
      %s28 = sshll.u32 [#allocation2], 4
      %s29 = int_to_ptr.vmem [resolvable:$true] %s28
      %31 = dma.hbm_to_vmem [thread:$0]  %s27, 128, %s29, [#allocation3]
    $region5: #{tpu_custom_call.1} parent=1 // pred_fallthru
      _
    // Predicated region
    $region6: #{tpu_custom_call.1} parent=1 // pred_check
      _
    $region7: #{tpu_custom_call.1} parent=1 // pred_check_branch
      %33 = sbr.rel (0) target = $region9
    $region8: #{tpu_custom_call.1} parent=1 // pred_region
      %35 = vsyncadd [#allocation6], 0
      %s37 = sshll.u32 %s1, 4
      %s38 = int_to_ptr.hbm [resolvable:$true] %s37
      %s39 = sshll.u32 [#allocation5], 4
      %s40 = int_to_ptr.vmem [resolvable:$true] %s39
      %42 = dma.hbm_to_vmem [thread:$0]  %s38, 128, %s40, [#allocation6]
    $region9: #{tpu_custom_call.1} parent=1 // pred_fallthru
      _
    // Predicated region
    $region10: #{tpu_custom_call.1} parent=1 // pred_check
      _
    $region11: #{tpu_custom_call.1} parent=1 // pred_check_branch
      %44 = sbr.rel (0) target = $region13
    $region12: #{tpu_custom_call.1} parent=1 // pred_region
      %46 = vsyncadd [#allocation6], 0
      %s47 = sshll.u32 %s2, 4
      %s48 = int_to_ptr.hbm [resolvable:$true] %s47
      %s49 = sshll.u32 [#allocation7], 4
      %s50 = int_to_ptr.vmem [resolvable:$true] %s49
      %55 = dma.hbm_to_vmem [thread:$0]  %s48, 6144, %s50, [#allocation6], 384, 384, 24
    $region13: #{tpu_custom_call.1} parent=1 // pred_fallthru
      _
    // Predicated region
    $region14: #{tpu_custom_call.1} parent=1 // pred_check
      _
    $region15: #{tpu_custom_call.1} parent=1 // pred_check_branch
      %57 = sbr.rel (0) target = $region17
    $region16: #{tpu_custom_call.1} parent=1 // pred_region
      %59 = vsyncadd [#allocation9], 0
      %s60 = sshll.u32 %s3, 4
      %s61 = int_to_ptr.hbm [resolvable:$true] %s60
      %s62 = sshll.u32 [#allocation8], 4
      %s63 = int_to_ptr.vmem [resolvable:$true] %s62
      %68 = dma.hbm_to_vmem [thread:$0]  %s61, 6144, %s63, [#allocation9], 384, 384, 24
    $region17: #{tpu_custom_call.1} parent=1 // pred_fallthru
      _
    // Predicated region
    $region18: #{tpu_custom_call.1} parent=1 // pred_check
      _
    $region19: #{tpu_custom_call.1} parent=1 // pred_check_branch
      %70 = sbr.rel (0) target = $region21
    $region20: #{tpu_custom_call.1} parent=1 // pred_region
      _
    $region21: #{tpu_custom_call.1} parent=1 // pred_fallthru
      _
    // Predicated region
    $region22: #{tpu_custom_call.1} parent=1 // pred_check
      _
    $region23: #{tpu_custom_call.1} parent=1 // pred_check_branch
      %72 = sbr.rel (0) target = $region25
    $region24: #{tpu_custom_call.1} parent=1 // pred_region
      _
    $region25: #{tpu_custom_call.1} parent=1 // pred_fallthru
      _
    // Predicated region
    $region26: #{tpu_custom_call.1} parent=1 // pred_check
      _
    $region27: #{tpu_custom_call.1} parent=1 // pred_check_branch
      %74 = sbr.rel (0) target = $region29
    $region28: #{tpu_custom_call.1} parent=1 // pred_region
      _
    $region29: #{tpu_custom_call.1} parent=1 // pred_fallthru
      _
    // Predicated region
    $region30: #{tpu_custom_call.1} parent=1 // pred_check
      _
    $region31: #{tpu_custom_call.1} parent=1 // pred_check_branch
      %76 = sbr.rel (0) target = $region33
    $region32: #{tpu_custom_call.1} parent=1 // pred_region
      %78 = vsyncadd [#allocation9], 0
      %s79 = sshll.u32 %s7, 4
      %s80 = int_to_ptr.hbm [resolvable:$true] %s79
      %s81 = sshll.u32 [#allocation10], 4
      %s82 = int_to_ptr.vmem [resolvable:$true] %s81
      %87 = dma.hbm_to_vmem [thread:$0]  %s80, 2048, %s82, [#allocation9], 128, 128, 8
    $region33: #{tpu_custom_call.1} parent=1 // pred_fallthru
      _
    // Predicated region
    $region34: #{tpu_custom_call.1} parent=1 // pred_check
      _
    $region35: #{tpu_custom_call.1} parent=1 // pred_check_branch
      %89 = sbr.rel (0) target = $region37
    $region36: #{tpu_custom_call.1} parent=1 // pred_region
      _
    $region37: #{tpu_custom_call.1} parent=1 // pred_fallthru
      _
    // Predicated region
    $region38: #{tpu_custom_call.1} parent=1 // pred_check
      _
    $region39: #{tpu_custom_call.1} parent=1 // pred_check_branch
      %91 = sbr.rel (0) target = $region41
    $region40: #{tpu_custom_call.1} parent=1 // pred_region
      %93 = dma.done [#allocation3], 128
    $region41: #{tpu_custom_call.1} parent=1 // pred_fallthru
      _
    // Predicated region
    $region42: #{tpu_custom_call.1} parent=1 // pred_check
      _
    $region43: #{tpu_custom_call.1} parent=1 // pred_check_branch
      %95 = sbr.rel (0) target = $region45
    $region44: #{tpu_custom_call.1} parent=1 // pred_region
      %97 = dma.done [#allocation6], 128
    $region45: #{tpu_custom_call.1} parent=1 // pred_fallthru
      _
    // Predicated region
    $region46: #{tpu_custom_call.1} parent=1 // pred_check
      _
    $region47: #{tpu_custom_call.1} parent=1 // pred_check_branch
      %99 = sbr.rel (0) target = $region49
    $region48: #{tpu_custom_call.1} parent=1 // pred_region
      %101 = dma.done [#allocation6], 6144
    $region49: #{tpu_custom_call.1} parent=1 // pred_fallthru
      _
    // Predicated region
    $region50: #{tpu_custom_call.1} parent=1 // pred_check
      _
    $region51: #{tpu_custom_call.1} parent=1 // pred_check_branch
      %103 = sbr.rel (0) target = $region53
    $region52: #{tpu_custom_call.1} parent=1 // pred_region
      %105 = dma.done [#allocation9], 6144
    $region53: #{tpu_custom_call.1} parent=1 // pred_fallthru
      _
    // Predicated region
    $region54: #{tpu_custom_call.1} parent=1 // pred_check
      _
    $region55: #{tpu_custom_call.1} parent=1 // pred_check_branch
      %107 = sbr.rel (0) target = $region57
    $region56: #{tpu_custom_call.1} parent=1 // pred_region
      %109 = dma.done [#allocation9], 2048
    $region57: #{tpu_custom_call.1} parent=1 // pred_fallthru
      _
    %v110 = vlaneseq
    %v111 = vand.u32 %v110, 127
    %vm112 = vcmp.lt.s32.totalorder %v111, 18
    %v113 = vld [vmem:[#allocation2] sm:$0xff]
    %v114 = vld [vmem:[#allocation5] sm:$0xff]
    %v115 = vld [vmem:[#allocation7] sm:$0xff]
    %v116 = vld [vmem:[#allocation7 + $0x8] sm:$0xff]
    %v117 = vld [vmem:[#allocation7 + $0x10] sm:$0xff]
    %v118 = vld [vmem:[#allocation7 + $0x18] sm:$0xff]
    %v119 = vld [vmem:[#allocation7 + $0x20] sm:$0xff]
    %v120 = vld [vmem:[#allocation7 + $0x28] sm:$0xff]
    %v121 = vld [vmem:[#allocation7 + $0x30] sm:$0xff]
    %v122 = vld [vmem:[#allocation7 + $0x38] sm:$0xff]
    %v123 = vld [vmem:[#allocation7 + $0x40] sm:$0xff]
    %v124 = vld [vmem:[#allocation7 + $0x48] sm:$0xff]
    %v125 = vld [vmem:[#allocation7 + $0x50] sm:$0xff]
    %v126 = vld [vmem:[#allocation7 + $0x58] sm:$0xff]
    %v127 = vld [vmem:[#allocation7 + $0x60] sm:$0xff]
    %v128 = vld [vmem:[#allocation7 + $0x68] sm:$0xff]
    %v129 = vld [vmem:[#allocation7 + $0x70] sm:$0xff]
    %v130 = vld [vmem:[#allocation7 + $0x78] sm:$0xff]
    %v131 = vld [vmem:[#allocation7 + $0x80] sm:$0xff]
    %v132 = vld [vmem:[#allocation7 + $0x88] sm:$0xff]
    %v133 = vld [vmem:[#allocation7 + $0x90] sm:$0xff]
    %v134 = vld [vmem:[#allocation7 + $0x98] sm:$0xff]
    %v135 = vld [vmem:[#allocation7 + $0xa0] sm:$0xff]
    %v136 = vld [vmem:[#allocation7 + $0xa8] sm:$0xff]
    %v137 = vld [vmem:[#allocation7 + $0xb0] sm:$0xff]
    %v138 = vld [vmem:[#allocation7 + $0xb8] sm:$0xff]
    %v139 = vld [vmem:[#allocation7 + $0xc0] sm:$0xff]
    %v140 = vld [vmem:[#allocation7 + $0xc8] sm:$0xff]
    %v141 = vld [vmem:[#allocation7 + $0xd0] sm:$0xff]
    %v142 = vld [vmem:[#allocation7 + $0xd8] sm:$0xff]
    %v143 = vld [vmem:[#allocation7 + $0xe0] sm:$0xff]
    %v144 = vld [vmem:[#allocation7 + $0xe8] sm:$0xff]
    %v145 = vld [vmem:[#allocation7 + $0xf0] sm:$0xff]
    %v146 = vld [vmem:[#allocation7 + $0xf8] sm:$0xff]
    %v147 = vld [vmem:[#allocation7 + $0x100] sm:$0xff]
    %v148 = vld [vmem:[#allocation7 + $0x108] sm:$0xff]
    %v149 = vld [vmem:[#allocation7 + $0x110] sm:$0xff]
    %v150 = vld [vmem:[#allocation7 + $0x118] sm:$0xff]
    %v151 = vld [vmem:[#allocation7 + $0x120] sm:$0xff]
    %v152 = vld [vmem:[#allocation7 + $0x128] sm:$0xff]
    %v153 = vld [vmem:[#allocation7 + $0x130] sm:$0xff]
    %v154 = vld [vmem:[#allocation7 + $0x138] sm:$0xff]
    %v155 = vld [vmem:[#allocation7 + $0x140] sm:$0xff]
    %v156 = vld [vmem:[#allocation7 + $0x148] sm:$0xff]
    %v157 = vld [vmem:[#allocation7 + $0x150] sm:$0xff]
    %v158 = vld [vmem:[#allocation7 + $0x158] sm:$0xff]
    %v159 = vld [vmem:[#allocation7 + $0x160] sm:$0xff]
    %v160 = vld [vmem:[#allocation7 + $0x168] sm:$0xff]
    %v161 = vld [vmem:[#allocation7 + $0x170] sm:$0xff]
    %v162 = vld [vmem:[#allocation7 + $0x178] sm:$0xff]
    %v163 = vld [vmem:[#allocation8] sm:$0xff]
    %v164 = vld [vmem:[#allocation8 + $0x8] sm:$0xff]
    %v165 = vld [vmem:[#allocation8 + $0x10] sm:$0xff]
    %v166 = vld [vmem:[#allocation8 + $0x18] sm:$0xff]
    %v167 = vld [vmem:[#allocation8 + $0x20] sm:$0xff]
    %v168 = vld [vmem:[#allocation8 + $0x28] sm:$0xff]
    %v169 = vld [vmem:[#allocation8 + $0x30] sm:$0xff]
    %v170 = vld [vmem:[#allocation8 + $0x38] sm:$0xff]
    %v171 = vld [vmem:[#allocation8 + $0x40] sm:$0xff]
    %v172 = vld [vmem:[#allocation8 + $0x48] sm:$0xff]
    %v173 = vld [vmem:[#allocation8 + $0x50] sm:$0xff]
    %v174 = vld [vmem:[#allocation8 + $0x58] sm:$0xff]
    %v175 = vld [vmem:[#allocation8 + $0x60] sm:$0xff]
    %v176 = vld [vmem:[#allocation8 + $0x68] sm:$0xff]
    %v177 = vld [vmem:[#allocation8 + $0x70] sm:$0xff]
    %v178 = vld [vmem:[#allocation8 + $0x78] sm:$0xff]
    %v179 = vld [vmem:[#allocation8 + $0x80] sm:$0xff]
    %v180 = vld [vmem:[#allocation8 + $0x88] sm:$0xff]
    %v181 = vld [vmem:[#allocation8 + $0x90] sm:$0xff]
    %v182 = vld [vmem:[#allocation8 + $0x98] sm:$0xff]
    %v183 = vld [vmem:[#allocation8 + $0xa0] sm:$0xff]
    %v184 = vld [vmem:[#allocation8 + $0xa8] sm:$0xff]
    %v185 = vld [vmem:[#allocation8 + $0xb0] sm:$0xff]
    %v186 = vld [vmem:[#allocation8 + $0xb8] sm:$0xff]
    %v187 = vld [vmem:[#allocation8 + $0xc0] sm:$0xff]
    %v188 = vld [vmem:[#allocation8 + $0xc8] sm:$0xff]
    %v189 = vld [vmem:[#allocation8 + $0xd0] sm:$0xff]
    %v190 = vld [vmem:[#allocation8 + $0xd8] sm:$0xff]
    %v191 = vld [vmem:[#allocation8 + $0xe0] sm:$0xff]
    %v192 = vld [vmem:[#allocation8 + $0xe8] sm:$0xff]
    %v193 = vld [vmem:[#allocation8 + $0xf0] sm:$0xff]
    %v194 = vld [vmem:[#allocation8 + $0xf8] sm:$0xff]
    %v195 = vld [vmem:[#allocation8 + $0x100] sm:$0xff]
    %v196 = vld [vmem:[#allocation8 + $0x108] sm:$0xff]
    %v197 = vld [vmem:[#allocation8 + $0x110] sm:$0xff]
    %v198 = vld [vmem:[#allocation8 + $0x118] sm:$0xff]
    %v199 = vld [vmem:[#allocation8 + $0x120] sm:$0xff]
    %v200 = vld [vmem:[#allocation8 + $0x128] sm:$0xff]
    %v201 = vld [vmem:[#allocation8 + $0x130] sm:$0xff]
    %v202 = vld [vmem:[#allocation8 + $0x138] sm:$0xff]
    %v203 = vld [vmem:[#allocation8 + $0x140] sm:$0xff]
    %v204 = vld [vmem:[#allocation8 + $0x148] sm:$0xff]
    %v205 = vld [vmem:[#allocation8 + $0x150] sm:$0xff]
    %v206 = vld [vmem:[#allocation8 + $0x158] sm:$0xff]
    %v207 = vld [vmem:[#allocation8 + $0x160] sm:$0xff]
    %v208 = vld [vmem:[#allocation8 + $0x168] sm:$0xff]
    %v209 = vld [vmem:[#allocation8 + $0x170] sm:$0xff]
    %v210 = vld [vmem:[#allocation8 + $0x178] sm:$0xff]
    %v211 = vld [vmem:[%s4] sm:$0x3]
    %v212 = vld [vmem:[%s5] sm:$0x1]
    %v213 = vld [vmem:[%s6] sm:$0x1]
    %v214 = vld [vmem:[#allocation10] sm:$0xff]
    %v215 = vld [vmem:[#allocation10 + $0x8] sm:$0xff]
    %v216 = vld [vmem:[#allocation10 + $0x10] sm:$0xff]
    %v217 = vld [vmem:[#allocation10 + $0x18] sm:$0xff]
    %v218 = vld [vmem:[#allocation10 + $0x20] sm:$0xff]
    %v219 = vld [vmem:[#allocation10 + $0x28] sm:$0xff]
    %v220 = vld [vmem:[#allocation10 + $0x30] sm:$0xff]
    %v221 = vld [vmem:[#allocation10 + $0x38] sm:$0xff]
    %v222 = vld [vmem:[#allocation10 + $0x40] sm:$0xff]
    %v223 = vld [vmem:[#allocation10 + $0x48] sm:$0xff]
    %v224 = vld [vmem:[#allocation10 + $0x50] sm:$0xff]
    %v225 = vld [vmem:[#allocation10 + $0x58] sm:$0xff]
    %v226 = vld [vmem:[#allocation10 + $0x60] sm:$0xff]
    %v227 = vld [vmem:[#allocation10 + $0x68] sm:$0xff]
    %v228 = vld [vmem:[#allocation10 + $0x70] sm:$0xff]
    %v229 = vld [vmem:[#allocation10 + $0x78] sm:$0xff]
    %v230 = vld [vmem:[%s8] sm:$0x1]
    %231 = vmatpush.msra.mxu0 %v160
    %232 = vmatpush.msra.mxu0 %v157
    %233 = vmatpush.msra.mxu0 %v154
    %234 = vmatpush.msra.mxu0 %v151
    %235 = vmatpush.msra.mxu0 %v148
    %236 = vmatpush.msra.mxu0 %v145
    %237 = vmatpush.msra.mxu0 %v142
    %238 = vmatpush.msra.mxu0 %v139
    %239 = vmatpush.msra.mxu0 %v136
    %240 = vmatpush.msra.mxu0 %v133
    %241 = vmatpush.msra.mxu0 %v130
    %242 = vmatpush.msra.mxu0 %v127
    %243 = vmatpush.msra.mxu0 %v124
    %244 = vmatpush.msra.mxu0 %v121
    %245 = vmatpush.msra.mxu0 %v118
    %246 = vmatpush.msra.mxu0 %v115
    %247 = vmatmul.f32.gmra.mxu0 %v113
    %v248 = vpop.f32.mrf.mxu0
    %v249 = vadd.f32 0.0, %v248
    %250 = vdwg.mxu0
    %251 = vmatpush.msra.mxu0 %v161
    %252 = vmatpush.msra.mxu0 %v158
    %253 = vmatpush.msra.mxu0 %v155
    %254 = vmatpush.msra.mxu0 %v152
    %255 = vmatpush.msra.mxu0 %v149
    %256 = vmatpush.msra.mxu0 %v146
    %257 = vmatpush.msra.mxu0 %v143
    %258 = vmatpush.msra.mxu0 %v140
    %259 = vmatpush.msra.mxu0 %v137
    %260 = vmatpush.msra.mxu0 %v134
    %261 = vmatpush.msra.mxu0 %v131
    %262 = vmatpush.msra.mxu0 %v128
    %263 = vmatpush.msra.mxu0 %v125
    %264 = vmatpush.msra.mxu0 %v122
    %265 = vmatpush.msra.mxu0 %v119
    %266 = vmatpush.msra.mxu0 %v116
    %267 = vmatmul.f32.gmra.mxu0 %v113
    %v268 = vpop.f32.mrf.mxu0
    %v269 = vadd.f32 0.0, %v268
    %270 = vdwg.mxu0
    %271 = vmatpush.msra.mxu0 %v162
    %272 = vmatpush.msra.mxu0 %v159
    %273 = vmatpush.msra.mxu0 %v156
    %274 = vmatpush.msra.mxu0 %v153
    %275 = vmatpush.msra.mxu0 %v150
    %276 = vmatpush.msra.mxu0 %v147
    %277 = vmatpush.msra.mxu0 %v144
    %278 = vmatpush.msra.mxu0 %v141
    %279 = vmatpush.msra.mxu0 %v138
    %280 = vmatpush.msra.mxu0 %v135
    %281 = vmatpush.msra.mxu0 %v132
    %282 = vmatpush.msra.mxu0 %v129
    %283 = vmatpush.msra.mxu0 %v126
    %284 = vmatpush.msra.mxu0 %v123
    %285 = vmatpush.msra.mxu0 %v120
    %286 = vmatpush.msra.mxu0 %v117
    %287 = vmatmul.f32.gmra.mxu0 %v113
    %v288 = vpop.f32.mrf.mxu0
    %v289 = vadd.f32 0.0, %v288
    %290 = vdwg.mxu0
    %291 = vmatpush.msra.mxu0 %v208
    %292 = vmatpush.msra.mxu0 %v205
    %293 = vmatpush.msra.mxu0 %v202
    %294 = vmatpush.msra.mxu0 %v199
    %295 = vmatpush.msra.mxu0 %v196
    %296 = vmatpush.msra.mxu0 %v193
    %297 = vmatpush.msra.mxu0 %v190
    %298 = vmatpush.msra.mxu0 %v187
    %299 = vmatpush.msra.mxu0 %v184
    %300 = vmatpush.msra.mxu0 %v181
    %301 = vmatpush.msra.mxu0 %v178
    %302 = vmatpush.msra.mxu0 %v175
    %303 = vmatpush.msra.mxu0 %v172
    %304 = vmatpush.msra.mxu0 %v169
    %305 = vmatpush.msra.mxu0 %v166
    %306 = vmatpush.msra.mxu0 %v163
    %307 = vmatmul.f32.gmra.mxu0 %v114
    %v308 = vpop.f32.mrf.mxu0
    %v309 = vadd.f32 0.0, %v308
    %310 = vdwg.mxu0
    %311 = vmatpush.msra.mxu0 %v209
    %312 = vmatpush.msra.mxu0 %v206
    %313 = vmatpush.msra.mxu0 %v203
    %314 = vmatpush.msra.mxu0 %v200
    %315 = vmatpush.msra.mxu0 %v197
    %316 = vmatpush.msra.mxu0 %v194
    %317 = vmatpush.msra.mxu0 %v191
    %318 = vmatpush.msra.mxu0 %v188
    %319 = vmatpush.msra.mxu0 %v185
    %320 = vmatpush.msra.mxu0 %v182
    %321 = vmatpush.msra.mxu0 %v179
    %322 = vmatpush.msra.mxu0 %v176
    %323 = vmatpush.msra.mxu0 %v173
    %324 = vmatpush.msra.mxu0 %v170
    %325 = vmatpush.msra.mxu0 %v167
    %326 = vmatpush.msra.mxu0 %v164
    %327 = vmatmul.f32.gmra.mxu0 %v114
    %v328 = vpop.f32.mrf.mxu0
    %v329 = vadd.f32 0.0, %v328
    %330 = vdwg.mxu0
    %331 = vmatpush.msra.mxu0 %v210
    %332 = vmatpush.msra.mxu0 %v207
    %333 = vmatpush.msra.mxu0 %v204
    %334 = vmatpush.msra.mxu0 %v201
    %335 = vmatpush.msra.mxu0 %v198
    %336 = vmatpush.msra.mxu0 %v195
    %337 = vmatpush.msra.mxu0 %v192
    %338 = vmatpush.msra.mxu0 %v189
    %339 = vmatpush.msra.mxu0 %v186
    %340 = vmatpush.msra.mxu0 %v183
    %341 = vmatpush.msra.mxu0 %v180
    %342 = vmatpush.msra.mxu0 %v177
    %343 = vmatpush.msra.mxu0 %v174
    %344 = vmatpush.msra.mxu0 %v171
    %345 = vmatpush.msra.mxu0 %v168
    %346 = vmatpush.msra.mxu0 %v165
    %347 = vmatmul.f32.gmra.mxu0 %v114
    %v348 = vpop.f32.mrf.mxu0
    %v349 = vadd.f32 0.0, %v348
    %350 = vdwg.mxu0
    %v351 = vadd.f32 %v249, %v309
    %v352 = vadd.f32 %v269, %v329
    %v354 = vperm.slane %v211, 0
    %v355 = vperm.slane %v211, 1
    %v358 = vadd.f32 %v351, %v354
    %v359 = vadd.f32 %v352, %v355
    %v360 = vxor.u32 %v358, 2147483648
    %v361 = vmul.f32 %v360, 1.442695
    %v362 = vpow.pop %v361
    %v363 = vadd.f32 %v362, 1.0
    %v364 = vrcp.pop %v363
    %v365 = vmul.f32 %v363, %v364
    %v366 = vsub.f32 1.0, %v365
    %v367 = vmul.f32 %v364, %v366
    %v368 = vadd.f32 %v364, %v367
    %vm369 = vweird.f32 %v363
    %vm370 = vweird.f32 %v364
    %vm371 = vmor %vm369, %vm370
    %v372 = vsel %vm371, %v364, %v368
    %v373 = vand.u32 2147483647, %v363
    %vm374 = vcmp.eq.f32.partialorder %v373, 8.507059e+37
    %v375 = vand.u32 %v363, 2147483648
    %v376 = vor.u32 1.1754944e-38, %v375
    %v377 = vsel %vm374, %v376, %v372
    %v378 = vmul.f32 1.0, %v377
    %v379 = vxor.u32 %v359, 2147483648
    %v380 = vmul.f32 %v379, 1.442695
    %v381 = vpow.pop %v380
    %v382 = vadd.f32 %v381, 1.0
    %v383 = vrcp.pop %v382
    %v384 = vmul.f32 %v382, %v383
    %v385 = vsub.f32 1.0, %v384
    %v386 = vmul.f32 %v383, %v385
    %v387 = vadd.f32 %v383, %v386
    %vm388 = vweird.f32 %v382
    %vm389 = vweird.f32 %v383
    %vm390 = vmor %vm388, %vm389
    %v391 = vsel %vm390, %v383, %v387
    %v392 = vand.u32 2147483647, %v382
    %vm393 = vcmp.eq.f32.partialorder %v392, 8.507059e+37
    %v394 = vand.u32 %v382, 2147483648
    %v395 = vor.u32 1.1754944e-38, %v394
    %v396 = vsel %vm393, %v395, %v391
    %v397 = vmul.f32 1.0, %v396
    %v399 = vperm.slane %v212, 0
    %v401 = vadd.f32 %v289, %v399
    %v403 = vperm.slane %v213, 0
    %v405 = vadd.f32 %v349, %v403
    %v406 = vmul.f32 %v378, %v405
    %v407 = vadd.f32 %v401, %v406
    %v408 = vtanh.pop %v407
    %v409 = vsub.f32 1.0, %v397
    %v410 = vmul.f32 %v409, %v408
    %v411 = vmul.f32 %v397, %v114
    %v412 = vadd.f32 %v410, %v411
    %v414 = vperm.slane %v230, 0
    %416 = vmatpush.msra.mxu0 %v229
    %417 = vmatpush.msra.mxu0 %v228
    %418 = vmatpush.msra.mxu0 %v227
    %419 = vmatpush.msra.mxu0 %v226
    %420 = vmatpush.msra.mxu0 %v225
    %421 = vmatpush.msra.mxu0 %v224
    %422 = vmatpush.msra.mxu0 %v223
    %423 = vmatpush.msra.mxu0 %v222
    %424 = vmatpush.msra.mxu0 %v221
    %425 = vmatpush.msra.mxu0 %v220
    %426 = vmatpush.msra.mxu0 %v219
    %427 = vmatpush.msra.mxu0 %v218
    %428 = vmatpush.msra.mxu0 %v217
    %429 = vmatpush.msra.mxu0 %v216
    %430 = vmatpush.msra.mxu0 %v215
    %431 = vmatpush.msra.mxu0 %v214
    %432 = vmatmul.f32.gmra.mxu0 %v412
    %v433 = vpop.f32.mrf.mxu0
    %v434 = vadd.f32 %v414, %v433
    %435 = vdwg.mxu0
    %v436 = vsel %vm112, %v434, -1e+30
    %437 = vmax.xlane.f32.xlu0 %v436
    %v438 = vpop.xlane.xlu0 %437
    %v439 = vsub.f32 %v436, %v438
    %v440 = vmul.f32 %v439, 1.442695
    %v441 = vpow.pop %v440
    %442 = vadd.xlane.f32.xlu0 %v441
    %v443 = vpop.xlane.xlu0 %442
    %v444 = vlog2.pop %v443
    %v445 = vmul.f32 %v444, 0.6931472
    %v446 = vadd.f32 %v438, %v445
    %v447 = vsub.f32 %v436, %v446
    %448 = vst [vmem:[#allocation11] sm:$0xff] %v447
    %449 = vst [vmem:[#allocation12] sm:$0xff] %v412
    // Predicated region
    $region58: #{tpu_custom_call.1} parent=1 // pred_check
      _
    $region59: #{tpu_custom_call.1} parent=1 // pred_check_branch
      %451 = sbr.rel (0) target = $region61
    $region60: #{tpu_custom_call.1} parent=1 // pred_region
      %453 = vsyncadd [#allocation4], 0
      %s455 = sshll.u32 [#allocation11], 4
      %s456 = int_to_ptr.vmem [resolvable:$true] %s455
      %s457 = sshll.u32 %s9, 4
      %s458 = int_to_ptr.hbm [resolvable:$true] %s457
      %460 = dma.vmem_to_hbm [thread:$0]  %s456, 128, %s458, [#allocation4]
    $region61: #{tpu_custom_call.1} parent=1 // pred_fallthru
      _
    // Predicated region
    $region62: #{tpu_custom_call.1} parent=1 // pred_check
      _
    $region63: #{tpu_custom_call.1} parent=1 // pred_check_branch
      %462 = sbr.rel (0) target = $region65
    $region64: #{tpu_custom_call.1} parent=1 // pred_region
      %464 = vsyncadd [#allocation13], 0
      %s466 = sshll.u32 [#allocation12], 4
      %s467 = int_to_ptr.vmem [resolvable:$true] %s466
      %s468 = sshll.u32 %s10, 4
      %s469 = int_to_ptr.hbm [resolvable:$true] %s468
      %471 = dma.vmem_to_hbm [thread:$0]  %s467, 128, %s469, [#allocation13]
    $region65: #{tpu_custom_call.1} parent=1 // pred_fallthru
      _
    // Predicated region
    $region66: #{tpu_custom_call.1} parent=1 // pred_check
      _
    $region67: #{tpu_custom_call.1} parent=1 // pred_check_branch
      %473 = sbr.rel (0) target = $region69
    $region68: #{tpu_custom_call.1} parent=1 // pred_region
      %475 = dma.done [#allocation4], 128
    $region69: #{tpu_custom_call.1} parent=1 // pred_fallthru
      _
    // Predicated region
    $region70: #{tpu_custom_call.1} parent=1 // pred_check
      _
    $region71: #{tpu_custom_call.1} parent=1 // pred_check_branch
      %477 = sbr.rel (0) target = $region73
    $region72: #{tpu_custom_call.1} parent=1 // pred_region
      %479 = dma.done [#allocation13], 128
    $region73: #{tpu_custom_call.1} parent=1 // pred_fallthru
      _
    %480 = vsyncpa [#allocation3], 1
    %481 = vsyncpa [#allocation6], 1
    %482 = vsyncpa [#allocation9], 1
    %483 = vsyncpa [#allocation4], 1
    %484 = vsyncpa [#allocation13], 1

</llo_original>
